<compile_context>
chip_gen: v6e
topology: v6e:2x2x1
jax: 0.10.0
libtpu: 0.0.40
codegen_flags: <defaults>
</compile_context>

<pallas_src>
import functools

import jax
import jax.numpy as jnp
from jax.experimental import pallas as pl
from jax.experimental.pallas import tpu as pltpu


def _make_modmix_kernel(n_input: int, n_output: int, batch_block: int):
    """Builds kernel(mix_ref, sig_0..sig_{N-1}, out_0..out_{M-1}).

    mix_ref : (B_pad, N*M) f32, full array resident in VMEM (constant index_map)
    sig_n   : (BB, TT)     f32 blocks, one per input signal
    out_m   : (BB, TT)     f32 blocks, one per output signal
    """

    def kernel(mix_ref, *refs):
        sig_refs = refs[:n_input]
        out_refs = refs[n_input:]

        bi = pl.program_id(0)
        # Slice the BB mix rows for this batch block from the resident matrix.
        mix = mix_ref[pl.ds(bi * batch_block, batch_block), :]   # (BB, N*M)

        # Load each signal block once; reused for all M outputs.
        sigs = [s[...] for s in sig_refs]                        # each (BB, TT)

        # Unrolled VPU multiply-accumulate over the tiny, static N axis:
        #   out_m[b, t] = sum_n mix[b, n*M + m] * sig_n[b, t]
        for m in range(n_output):
            acc = mix[:, m:m + 1] * sigs[0]                      # (BB, TT)
            for n in range(1, n_input):
                coeff = mix[:, n * n_output + m:n * n_output + m + 1]  # (BB, 1)
                acc = acc + coeff * sigs[n]
            out_refs[m][...] = acc.astype(out_refs[m].dtype)

    return kernel


def _pick_time_tile(t: int) -> int:
    # Lane-dense time tile. Small buffers use the full extent (always legal for
    # the last BlockSpec dim); long buffers use a fixed 8192-lane tile (multiple
    # of 128) and rely on the cdiv grid -- Pallas clips the ragged last block.
    cap = 8192
    return t if t <= cap else cap


def _pick_batch_block(b: int) -> int:
    # Full extent for tiny batches; otherwise 8 so blocks fill the 8 sublanes
    # of a vreg and stay (8,128)-tileable. Ragged last batch block is clipped.
    return b if b <= 8 else 8


def _mix_pallas(mix_flat, signals, n_output, *, time_tile=None, batch_block=None):
    """mix_flat: (B, N*M) f32; signals: tuple of N (B, T) f32 -> tuple of M (B, T)."""
    n_input = len(signals)
    b, t = signals[0].shape
    assert mix_flat.shape == (b, n_input * n_output)

    bb = batch_block if batch_block is not None else _pick_batch_block(b)
    tt = time_tile if time_tile is not None else _pick_time_tile(t)

    nb = pl.cdiv(b, bb)
    nt = pl.cdiv(t, tt)

    # Pad the (tiny) mix matrix so the in-kernel dynamic slice of the ragged
    # last batch block never reads out of bounds.
    b_pad = nb * bb
    if b_pad != b:
        mix_flat = jnp.pad(mix_flat, ((0, b_pad - b), (0, 0)))

    sig_spec = pl.BlockSpec((bb, tt), lambda bi, ti: (bi, ti))
    out_spec = pl.BlockSpec((bb, tt), lambda bi, ti: (bi, ti))
    # Full-array mix block, constant index_map -> DMA'd once, resident in VMEM.
    mix_spec = pl.BlockSpec((b_pad, n_input * n_output), lambda bi, ti: (0, 0))

    kernel = _make_modmix_kernel(n_input, n_output, bb)

    return pl.pallas_call(
        kernel,
        out_shape=tuple(
            jax.ShapeDtypeStruct((b, t), signals[0].dtype) for _ in range(n_output)
        ),
        grid_spec=pltpu.PrefetchScalarGridSpec(
            num_scalar_prefetch=0,
            grid=(nb, nt),
            in_specs=[mix_spec] + [sig_spec] * n_input,
            out_specs=tuple(out_spec for _ in range(n_output)),
        ),
        compiler_params=pltpu.CompilerParams(
            # Both grid axes are independent -> megacore sharding on v7x (2 TCs).
            dimension_semantics=("parallel", "parallel"),
            # Per-step footprint is small (<5 MiB at BB=8, TT=8192, N=4, M=5);
            # 32 MiB is within the scoped/physical limits on v5e/v6e/v7x.
            vmem_limit_bytes=32 * 1024 * 1024,
        ),
    )(mix_flat, *signals)


def modulation_mixer_forward(params_0to1, curves, *signals,
                             time_tile=None, batch_block=None):
    """ModulationMixer.forward.

    Args:
      params_0to1: (B, n_input, n_output) float32 normalized [0,1] parameters;
        params_0to1[b, i, j] is parameter "i->j" (same layout as the module's
        .view(B, n_input, n_output)).
      curves: length-n_input sequence; ModuleParameterRange(0,1,curve).from_0to1
        maps a normalized value x to x ** (1/curve) (torchsynth default 0.5).
      *signals: n_input modulation signals, each (B, T) float32.

    Returns:
      Tuple of n_output arrays, each (B, T) float32.
    """
    b, n_input, n_output = params_0to1.shape
    assert len(signals) == n_input
    curves_arr = jnp.asarray(curves, dtype=params_0to1.dtype)
    assert curves_arr.shape == (n_input,)
    # Tiny param prep left to jnp so XLA fuses it (B*N*M elements).
    mix = params_0to1 ** (1.0 / curves_arr)[None, :, None]      # (B, N, M)
    mix_flat = mix.reshape(b, n_input * n_output)               # (B, N*M), idx = n*M + m
    return _mix_pallas(mix_flat, tuple(signals), n_output,
                       time_tile=time_tile, batch_block=batch_block)


def _reference(params_0to1, curves, signals):
    """Plain-JAX reference mirroring the torch forward."""
    curves_arr = jnp.asarray(curves, dtype=jnp.float32)
    mix = params_0to1 ** (1.0 / curves_arr)[None, :, None]      # (B, N, M)
    mix = jnp.swapaxes(mix, 1, 2)                               # (B, M, N)
    sig = jnp.stack(signals, axis=1)                            # (B, N, T)
    # Broadcasted sum avoids MXU default-precision ambiguity in the reference.
    return jnp.sum(mix[:, :, :, None] * sig[:, None, :, :], axis=2)   # (B, M, T)


if __name__ == "__main__":
    key = jax.random.PRNGKey(0)

    # --- Case 1: small, Voice-like shapes (4 sources -> 5 destinations) ------
    batch_size, n_input, n_output, buffer_size = 4, 4, 5, 512
    curves = [0.5] * n_input

    kp, ks, key = jax.random.split(key, 3)
    params_0to1 = jax.random.uniform(
        kp, (batch_size, n_input, n_output), dtype=jnp.float32)
    sig_keys = jax.random.split(ks, n_input)
    signals = tuple(
        jax.random.uniform(k, (batch_size, buffer_size), dtype=jnp.float32)
        for k in sig_keys)

    outputs = modulation_mixer_forward(params_0to1, curves, *signals)
    outputs = jax.block_until_ready(outputs)

    ref = _reference(params_0to1, curves, signals)
    assert len(outputs) == n_output
    for j, out_j in enumerate(outputs):
        assert out_j.shape == (batch_size, buffer_size)
        assert out_j.dtype == jnp.float32
        assert bool(jnp.allclose(out_j, ref[:, j, :], rtol=1e-5, atol=1e-5))

    # --- Case 2: ragged batch/time blocks (B not multiple of BB, T not multiple
    # of the time tile) to exercise the clipped last blocks and mix padding. ---
    batch_size2, buffer_size2 = 12, 1000
    kp2, ks2, _ = jax.random.split(key, 3)
    params2 = jax.random.uniform(
        kp2, (batch_size2, n_input, n_output), dtype=jnp.float32)
    sig_keys2 = jax.random.split(ks2, n_input)
    signals2 = tuple(
        jax.random.uniform(k, (batch_size2, buffer_size2), dtype=jnp.float32)
        for k in sig_keys2)

    outputs2 = modulation_mixer_forward(
        params2, curves, *signals2, time_tile=256)   # forces ragged time blocks
    outputs2 = jax.block_until_ready(outputs2)

    ref2 = _reference(params2, curves, signals2)
    for j, out_j in enumerate(outputs2):
        assert out_j.shape == (batch_size2, buffer_size2)
        assert bool(jnp.allclose(out_j, ref2[:, j, :], rtol=1e-5, atol=1e-5))

    print("KERNEL_OK")
</pallas_src>

<mosaic_0001>
module attributes {stable_mosaic.version = 11 : i64} {
  func.func @kernel(%arg0: i32, %arg1: i32, %arg2: memref<4x20xf32, #tpu.memory_space<vmem>>, %arg3: memref<4x512xf32, #tpu.memory_space<vmem>>, %arg4: memref<4x512xf32, #tpu.memory_space<vmem>>, %arg5: memref<4x512xf32, #tpu.memory_space<vmem>>, %arg6: memref<4x512xf32, #tpu.memory_space<vmem>>, %arg7: memref<4x512xf32, #tpu.memory_space<vmem>>, %arg8: memref<4x512xf32, #tpu.memory_space<vmem>>, %arg9: memref<4x512xf32, #tpu.memory_space<vmem>>, %arg10: memref<4x512xf32, #tpu.memory_space<vmem>>, %arg11: memref<4x512xf32, #tpu.memory_space<vmem>>) attributes {dimension_semantics = [#tpu.dimension_semantics<parallel>, #tpu.dimension_semantics<parallel>], iteration_bounds = array<i64: 1, 1>, scalar_prefetch = 0 : i64, scratch_operands = 0 : i64, tpu.core_type = #tpu.core_type<tc>, window_params = [{pipeline_mode = #tpu.pipeline_mode<synchronous>, transform_indices = @transform_0, window_bounds = array<i64: 4, 20>}, {transform_indices = @transform_1, window_bounds = array<i64: 4, 512>}, {transform_indices = @transform_2, window_bounds = array<i64: 4, 512>}, {transform_indices = @transform_3, window_bounds = array<i64: 4, 512>}, {transform_indices = @transform_4, window_bounds = array<i64: 4, 512>}, {transform_indices = @transform_5, window_bounds = array<i64: 4, 512>}, {transform_indices = @transform_6, window_bounds = array<i64: 4, 512>}, {transform_indices = @transform_7, window_bounds = array<i64: 4, 512>}, {transform_indices = @transform_8, window_bounds = array<i64: 4, 512>}, {transform_indices = @transform_9, window_bounds = array<i64: 4, 512>}]} {
    %c4_i32 = arith.constant 4 : i32
    %0 = arith.muli %arg0, %c4_i32 : i32
    %1 = arith.index_cast %0 : i32 to index
    %c0 = arith.constant 0 : index
    %2 = vector.load %arg2[%1, %c0] : memref<4x20xf32, #tpu.memory_space<vmem>>, vector<4x20xf32>
    %c0_0 = arith.constant 0 : index
    %c0_1 = arith.constant 0 : index
    %3 = vector.load %arg3[%c0_0, %c0_1] : memref<4x512xf32, #tpu.memory_space<vmem>>, vector<4x512xf32>
    %c0_2 = arith.constant 0 : index
    %c0_3 = arith.constant 0 : index
    %4 = vector.load %arg4[%c0_2, %c0_3] : memref<4x512xf32, #tpu.memory_space<vmem>>, vector<4x512xf32>
    %c0_4 = arith.constant 0 : index
    %c0_5 = arith.constant 0 : index
    %5 = vector.load %arg5[%c0_4, %c0_5] : memref<4x512xf32, #tpu.memory_space<vmem>>, vector<4x512xf32>
    %c0_6 = arith.constant 0 : index
    %c0_7 = arith.constant 0 : index
    %6 = vector.load %arg6[%c0_6, %c0_7] : memref<4x512xf32, #tpu.memory_space<vmem>>, vector<4x512xf32>
    %7 = vector.extract_strided_slice %2 {offsets = [0, 0], sizes = [4, 1], strides = [1, 1]} : vector<4x20xf32> to vector<4x1xf32>
    %8 = vector.broadcast %7 : vector<4x1xf32> to vector<4x512xf32>
    %9 = arith.mulf %8, %3 : vector<4x512xf32>
    %10 = vector.extract_strided_slice %2 {offsets = [0, 5], sizes = [4, 1], strides = [1, 1]} : vector<4x20xf32> to vector<4x1xf32>
    %11 = vector.broadcast %10 : vector<4x1xf32> to vector<4x512xf32>
    %12 = arith.mulf %11, %4 : vector<4x512xf32>
    %13 = arith.addf %9, %12 : vector<4x512xf32>
    %14 = vector.extract_strided_slice %2 {offsets = [0, 10], sizes = [4, 1], strides = [1, 1]} : vector<4x20xf32> to vector<4x1xf32>
    %15 = vector.broadcast %14 : vector<4x1xf32> to vector<4x512xf32>
    %16 = arith.mulf %15, %5 : vector<4x512xf32>
    %17 = arith.addf %13, %16 : vector<4x512xf32>
    %18 = vector.extract_strided_slice %2 {offsets = [0, 15], sizes = [4, 1], strides = [1, 1]} : vector<4x20xf32> to vector<4x1xf32>
    %19 = vector.broadcast %18 : vector<4x1xf32> to vector<4x512xf32>
    %20 = arith.mulf %19, %6 : vector<4x512xf32>
    %21 = arith.addf %17, %20 : vector<4x512xf32>
    %c0_8 = arith.constant 0 : index
    %c0_9 = arith.constant 0 : index
    %22 = vector.load %arg7[%c0_8, %c0_9] : memref<4x512xf32, #tpu.memory_space<vmem>>, vector<4x512xf32>
    tpu.vector_store %arg7[%c0_8, %c0_9], %21 {strides = array<i32>} : memref<4x512xf32, #tpu.memory_space<vmem>>, vector<4x512xf32>,
    %23 = vector.extract_strided_slice %2 {offsets = [0, 1], sizes = [4, 1], strides = [1, 1]} : vector<4x20xf32> to vector<4x1xf32>
    %24 = vector.broadcast %23 : vector<4x1xf32> to vector<4x512xf32>
    %25 = arith.mulf %24, %3 : vector<4x512xf32>
    %26 = vector.extract_strided_slice %2 {offsets = [0, 6], sizes = [4, 1], strides = [1, 1]} : vector<4x20xf32> to vector<4x1xf32>
    %27 = vector.broadcast %26 : vector<4x1xf32> to vector<4x512xf32>
    %28 = arith.mulf %27, %4 : vector<4x512xf32>
    %29 = arith.addf %25, %28 : vector<4x512xf32>
    %30 = vector.extract_strided_slice %2 {offsets = [0, 11], sizes = [4, 1], strides = [1, 1]} : vector<4x20xf32> to vector<4x1xf32>
    %31 = vector.broadcast %30 : vector<4x1xf32> to vector<4x512xf32>
    %32 = arith.mulf %31, %5 : vector<4x512xf32>
    %33 = arith.addf %29, %32 : vector<4x512xf32>
    %34 = vector.extract_strided_slice %2 {offsets = [0, 16], sizes = [4, 1], strides = [1, 1]} : vector<4x20xf32> to vector<4x1xf32>
    %35 = vector.broadcast %34 : vector<4x1xf32> to vector<4x512xf32>
    %36 = arith.mulf %35, %6 : vector<4x512xf32>
    %37 = arith.addf %33, %36 : vector<4x512xf32>
    %c0_10 = arith.constant 0 : index
    %c0_11 = arith.constant 0 : index
    %38 = vector.load %arg8[%c0_10, %c0_11] : memref<4x512xf32, #tpu.memory_space<vmem>>, vector<4x512xf32>
    tpu.vector_store %arg8[%c0_10, %c0_11], %37 {strides = array<i32>} : memref<4x512xf32, #tpu.memory_space<vmem>>, vector<4x512xf32>,
    %39 = vector.extract_strided_slice %2 {offsets = [0, 2], sizes = [4, 1], strides = [1, 1]} : vector<4x20xf32> to vector<4x1xf32>
    %40 = vector.broadcast %39 : vector<4x1xf32> to vector<4x512xf32>
    %41 = arith.mulf %40, %3 : vector<4x512xf32>
    %42 = vector.extract_strided_slice %2 {offsets = [0, 7], sizes = [4, 1], strides = [1, 1]} : vector<4x20xf32> to vector<4x1xf32>
    %43 = vector.broadcast %42 : vector<4x1xf32> to vector<4x512xf32>
    %44 = arith.mulf %43, %4 : vector<4x512xf32>
    %45 = arith.addf %41, %44 : vector<4x512xf32>
    %46 = vector.extract_strided_slice %2 {offsets = [0, 12], sizes = [4, 1], strides = [1, 1]} : vector<4x20xf32> to vector<4x1xf32>
    %47 = vector.broadcast %46 : vector<4x1xf32> to vector<4x512xf32>
    %48 = arith.mulf %47, %5 : vector<4x512xf32>
    %49 = arith.addf %45, %48 : vector<4x512xf32>
    %50 = vector.extract_strided_slice %2 {offsets = [0, 17], sizes = [4, 1], strides = [1, 1]} : vector<4x20xf32> to vector<4x1xf32>
    %51 = vector.broadcast %50 : vector<4x1xf32> to vector<4x512xf32>
    %52 = arith.mulf %51, %6 : vector<4x512xf32>
    %53 = arith.addf %49, %52 : vector<4x512xf32>
    %c0_12 = arith.constant 0 : index
    %c0_13 = arith.constant 0 : index
    %54 = vector.load %arg9[%c0_12, %c0_13] : memref<4x512xf32, #tpu.memory_space<vmem>>, vector<4x512xf32>
    tpu.vector_store %arg9[%c0_12, %c0_13], %53 {strides = array<i32>} : memref<4x512xf32, #tpu.memory_space<vmem>>, vector<4x512xf32>,
    %55 = vector.extract_strided_slice %2 {offsets = [0, 3], sizes = [4, 1], strides = [1, 1]} : vector<4x20xf32> to vector<4x1xf32>
    %56 = vector.broadcast %55 : vector<4x1xf32> to vector<4x512xf32>
    %57 = arith.mulf %56, %3 : vector<4x512xf32>
    %58 = vector.extract_strided_slice %2 {offsets = [0, 8], sizes = [4, 1], strides = [1, 1]} : vector<4x20xf32> to vector<4x1xf32>
    %59 = vector.broadcast %58 : vector<4x1xf32> to vector<4x512xf32>
    %60 = arith.mulf %59, %4 : vector<4x512xf32>
    %61 = arith.addf %57, %60 : vector<4x512xf32>
    %62 = vector.extract_strided_slice %2 {offsets = [0, 13], sizes = [4, 1], strides = [1, 1]} : vector<4x20xf32> to vector<4x1xf32>
    %63 = vector.broadcast %62 : vector<4x1xf32> to vector<4x512xf32>
    %64 = arith.mulf %63, %5 : vector<4x512xf32>
    %65 = arith.addf %61, %64 : vector<4x512xf32>
    %66 = vector.extract_strided_slice %2 {offsets = [0, 18], sizes = [4, 1], strides = [1, 1]} : vector<4x20xf32> to vector<4x1xf32>
    %67 = vector.broadcast %66 : vector<4x1xf32> to vector<4x512xf32>
    %68 = arith.mulf %67, %6 : vector<4x512xf32>
    %69 = arith.addf %65, %68 : vector<4x512xf32>
    %c0_14 = arith.constant 0 : index
    %c0_15 = arith.constant 0 : index
    %70 = vector.load %arg10[%c0_14, %c0_15] : memref<4x512xf32, #tpu.memory_space<vmem>>, vector<4x512xf32>
    tpu.vector_store %arg10[%c0_14, %c0_15], %69 {strides = array<i32>} : memref<4x512xf32, #tpu.memory_space<vmem>>, vector<4x512xf32>,
    %71 = vector.extract_strided_slice %2 {offsets = [0, 4], sizes = [4, 1], strides = [1, 1]} : vector<4x20xf32> to vector<4x1xf32>
    %72 = vector.broadcast %71 : vector<4x1xf32> to vector<4x512xf32>
    %73 = arith.mulf %72, %3 : vector<4x512xf32>
    %74 = vector.extract_strided_slice %2 {offsets = [0, 9], sizes = [4, 1], strides = [1, 1]} : vector<4x20xf32> to vector<4x1xf32>
    %75 = vector.broadcast %74 : vector<4x1xf32> to vector<4x512xf32>
    %76 = arith.mulf %75, %4 : vector<4x512xf32>
    %77 = arith.addf %73, %76 : vector<4x512xf32>
    %78 = vector.extract_strided_slice %2 {offsets = [0, 14], sizes = [4, 1], strides = [1, 1]} : vector<4x20xf32> to vector<4x1xf32>
    %79 = vector.broadcast %78 : vector<4x1xf32> to vector<4x512xf32>
    %80 = arith.mulf %79, %5 : vector<4x512xf32>
    %81 = arith.addf %77, %80 : vector<4x512xf32>
    %82 = vector.extract_strided_slice %2 {offsets = [0, 19], sizes = [4, 1], strides = [1, 1]} : vector<4x20xf32> to vector<4x1xf32>
    %83 = vector.broadcast %82 : vector<4x1xf32> to vector<4x512xf32>
    %84 = arith.mulf %83, %6 : vector<4x512xf32>
    %85 = arith.addf %81, %84 : vector<4x512xf32>
    %c0_16 = arith.constant 0 : index
    %c0_17 = arith.constant 0 : index
    %86 = vector.load %arg11[%c0_16, %c0_17] : memref<4x512xf32, #tpu.memory_space<vmem>>, vector<4x512xf32>
    tpu.vector_store %arg11[%c0_16, %c0_17], %85 {strides = array<i32>} : memref<4x512xf32, #tpu.memory_space<vmem>>, vector<4x512xf32>,
    return
  }
  func.func @transform_0(%arg0: i32, %arg1: i32) -> (i32, i32) {
    %c0_i32 = arith.constant 0 : i32
    %c0_i32_0 = arith.constant 0 : i32
    %c0_i32_1 = arith.constant 0 : i32
    return %c0_i32, %c0_i32_0 : i32, i32
  }
  func.func @transform_1(%arg0: i32, %arg1: i32) -> (i32, i32) {
    %c0_i32 = arith.constant 0 : i32
    return %arg0, %arg1 : i32, i32
  }
  func.func @transform_2(%arg0: i32, %arg1: i32) -> (i32, i32) {
    %c0_i32 = arith.constant 0 : i32
    return %arg0, %arg1 : i32, i32
  }
  func.func @transform_3(%arg0: i32, %arg1: i32) -> (i32, i32) {
    %c0_i32 = arith.constant 0 : i32
    return %arg0, %arg1 : i32, i32
  }
  func.func @transform_4(%arg0: i32, %arg1: i32) -> (i32, i32) {
    %c0_i32 = arith.constant 0 : i32
    return %arg0, %arg1 : i32, i32
  }
  func.func @transform_5(%arg0: i32, %arg1: i32) -> (i32, i32) {
    %c0_i32 = arith.constant 0 : i32
    return %arg0, %arg1 : i32, i32
  }
  func.func @transform_6(%arg0: i32, %arg1: i32) -> (i32, i32) {
    %c0_i32 = arith.constant 0 : i32
    return %arg0, %arg1 : i32, i32
  }
  func.func @transform_7(%arg0: i32, %arg1: i32) -> (i32, i32) {
    %c0_i32 = arith.constant 0 : i32
    return %arg0, %arg1 : i32, i32
  }
  func.func @transform_8(%arg0: i32, %arg1: i32) -> (i32, i32) {
    %c0_i32 = arith.constant 0 : i32
    return %arg0, %arg1 : i32, i32
  }
  func.func @transform_9(%arg0: i32, %arg1: i32) -> (i32, i32) {
    %c0_i32 = arith.constant 0 : i32
    return %arg0, %arg1 : i32, i32
  }
}

</mosaic_0001>

<llo_original>
// kernel: tpu_custom_call.1
$region0: #{tpu_custom_call.1}
  #allocation0 [shape = 'u32[]', space=smem, size = 0x4, offset = 0x4, fixed_abs, tag = 'smem constant byte address 0x4 - core index']
  #allocation1 [shape = 'u32[144,128]{1,0:T(1,128)}', space=vmem, size = 0x12000, scoped, tag = 'internal scratch']
  %s0 = inlined_call_operand.hbm [shape: f32[4,20], index: 0, kind: input, shape index: {}]
  %s1 = inlined_call_operand.hbm [shape: f32[4,512], index: 1, kind: input, shape index: {}]
  %s2 = inlined_call_operand.hbm [shape: f32[4,512], index: 2, kind: input, shape index: {}]
  %s3 = inlined_call_operand.hbm [shape: f32[4,512], index: 3, kind: input, shape index: {}]
  %s4 = inlined_call_operand.hbm [shape: f32[4,512], index: 4, kind: input, shape index: {}]
  %s5 = inlined_call_operand.hbm [shape: f32[4,512], index: 5, kind: output, shape index: {0}]
  %s6 = inlined_call_operand.hbm [shape: f32[4,512], index: 6, kind: output, shape index: {1}]
  %s7 = inlined_call_operand.hbm [shape: f32[4,512], index: 7, kind: output, shape index: {2}]
  %s8 = inlined_call_operand.hbm [shape: f32[4,512], index: 8, kind: output, shape index: {3}]
  %s9 = inlined_call_operand.hbm [shape: f32[4,512], index: 9, kind: output, shape index: {4}]
  %10 = xla_tuple %s5, %s6, %s7, %s8, %s9
  %s11 = sld [smem:[#allocation0]]
  $region82: #{tpu_custom_call.1} parent=0
    _
  %s13 = ssub.s32 1, %s11
  %s14 = scalar_select 0, %s13, %s11
  $region1: #{tpu_custom_call.1} parent=0
    #allocation2 [shape = 'u8[2048]{0}', space=vmem, size = 0x800, scoped, tag = 'input window, operand 0, single buffered']
    #allocation3 [shape = 's32[1]{0}', space=sflag, size = 0x4, scoped, tag = 'scoped memory for tpu_custom_call.1']
    #allocation4 [shape = 's32[1]{0}', space=sflag, size = 0x4, scoped, tag = 'scoped memory for tpu_custom_call.1']
    #allocation5 [shape = 'u8[8192]{0}', space=vmem, size = 0x2000, scoped, tag = 'input window, operand 1, single buffered']
    #allocation6 [shape = 's32[1]{0}', space=sflag, size = 0x4, scoped, tag = 'scoped memory for tpu_custom_call.1']
    #allocation7 [shape = 'u8[8192]{0}', space=vmem, size = 0x2000, scoped, tag = 'input window, operand 2, single buffered']
    #allocation8 [shape = 'u8[8192]{0}', space=vmem, size = 0x2000, scoped, tag = 'input window, operand 3, single buffered']
    #allocation9 [shape = 's32[1]{0}', space=sflag, size = 0x4, scoped, tag = 'scoped memory for tpu_custom_call.1']
    #allocation10 [shape = 'u8[8192]{0}', space=vmem, size = 0x2000, scoped, tag = 'input window, operand 4, single buffered']
    #allocation11 [shape = 'u8[8192]{0}', space=vmem, size = 0x2000, scoped, tag = 'output window, operand 0, single buffered']
    #allocation12 [shape = 'u8[8192]{0}', space=vmem, size = 0x2000, scoped, tag = 'output window, operand 1, single buffered']
    #allocation13 [shape = 's32[1]{0}', space=sflag, size = 0x4, scoped, tag = 'scoped memory for tpu_custom_call.1']
    #allocation14 [shape = 'u8[8192]{0}', space=vmem, size = 0x2000, scoped, tag = 'output window, operand 2, single buffered']
    #allocation15 [shape = 'u8[8192]{0}', space=vmem, size = 0x2000, scoped, tag = 'output window, operand 3, single buffered']
    #allocation16 [shape = 's32[1]{0}', space=sflag, size = 0x4, scoped, tag = 'scoped memory for tpu_custom_call.1']
    #allocation17 [shape = 'u8[8192]{0}', space=vmem, size = 0x2000, scoped, tag = 'output window, operand 4, single buffered']
    %15 = vsyncpa [#allocation3], 0
    %16 = vsyncpa [#allocation6], 0
    %17 = vsyncpa [#allocation9], 0
    %18 = vsyncpa [#allocation4], 0
    %19 = vsyncpa [#allocation13], 0
    %20 = vsyncpa [#allocation16], 0
    // Predicated region
    $region2: #{tpu_custom_call.1} parent=1 // pred_check
      _
    $region3: #{tpu_custom_call.1} parent=1 // pred_check_branch
      %22 = sbr.rel (0) target = $region5
    $region4: #{tpu_custom_call.1} parent=1 // pred_region
      %s24 = ssub.s32 64, 64
      %25 = vsyncadd [#allocation3], %s24
      %s27 = sshll.u32 [#allocation2], 4
      %s28 = int_to_ptr.vmem [resolvable:$true] %s27
      %30 = dma.hbm_to_vmem [thread:$0]  %s0, 64, %s28, [#allocation3]
    $region5: #{tpu_custom_call.1} parent=1 // pred_fallthru
      _
    // Predicated region
    $region6: #{tpu_custom_call.1} parent=1 // pred_check
      _
    $region7: #{tpu_custom_call.1} parent=1 // pred_check_branch
      %32 = sbr.rel (0) target = $region9
    $region8: #{tpu_custom_call.1} parent=1 // pred_region
      %s34 = ssub.s32 256, 256
      %35 = vsyncadd [#allocation6], %s34
      %s37 = sshll.u32 [#allocation5], 4
      %s38 = int_to_ptr.vmem [resolvable:$true] %s37
      %40 = dma.hbm_to_vmem [thread:$0]  %s1, 256, %s38, [#allocation6]
    $region9: #{tpu_custom_call.1} parent=1 // pred_fallthru
      _
    // Predicated region
    $region10: #{tpu_custom_call.1} parent=1 // pred_check
      _
    $region11: #{tpu_custom_call.1} parent=1 // pred_check_branch
      %42 = sbr.rel (0) target = $region13
    $region12: #{tpu_custom_call.1} parent=1 // pred_region
      %s44 = ssub.s32 256, 256
      %45 = vsyncadd [#allocation6], %s44
      %s47 = sshll.u32 [#allocation7], 4
      %s48 = int_to_ptr.vmem [resolvable:$true] %s47
      %50 = dma.hbm_to_vmem [thread:$0]  %s2, 256, %s48, [#allocation6]
    $region13: #{tpu_custom_call.1} parent=1 // pred_fallthru
      _
    // Predicated region
    $region14: #{tpu_custom_call.1} parent=1 // pred_check
      _
    $region15: #{tpu_custom_call.1} parent=1 // pred_check_branch
      %52 = sbr.rel (0) target = $region17
    $region16: #{tpu_custom_call.1} parent=1 // pred_region
      %s54 = ssub.s32 256, 256
      %55 = vsyncadd [#allocation9], %s54
      %s57 = sshll.u32 [#allocation8], 4
      %s58 = int_to_ptr.vmem [resolvable:$true] %s57
      %60 = dma.hbm_to_vmem [thread:$0]  %s3, 256, %s58, [#allocation9]
    $region17: #{tpu_custom_call.1} parent=1 // pred_fallthru
      _
    // Predicated region
    $region18: #{tpu_custom_call.1} parent=1 // pred_check
      _
    $region19: #{tpu_custom_call.1} parent=1 // pred_check_branch
      %62 = sbr.rel (0) target = $region21
    $region20: #{tpu_custom_call.1} parent=1 // pred_region
      %s64 = ssub.s32 256, 256
      %65 = vsyncadd [#allocation9], %s64
      %s67 = sshll.u32 [#allocation10], 4
      %s68 = int_to_ptr.vmem [resolvable:$true] %s67
      %70 = dma.hbm_to_vmem [thread:$0]  %s4, 256, %s68, [#allocation9]
    $region21: #{tpu_custom_call.1} parent=1 // pred_fallthru
      _
    // Predicated region
    $region22: #{tpu_custom_call.1} parent=1 // pred_check
      _
    $region23: #{tpu_custom_call.1} parent=1 // pred_check_branch
      %72 = sbr.rel (0) target = $region25
    $region24: #{tpu_custom_call.1} parent=1 // pred_region
      %73 = dma.done [#allocation3], 64
    $region25: #{tpu_custom_call.1} parent=1 // pred_fallthru
      _
    // Predicated region
    $region26: #{tpu_custom_call.1} parent=1 // pred_check
      _
    $region27: #{tpu_custom_call.1} parent=1 // pred_check_branch
      %75 = sbr.rel (0) target = $region29
    $region28: #{tpu_custom_call.1} parent=1 // pred_region
      %76 = dma.done [#allocation6], 256
    $region29: #{tpu_custom_call.1} parent=1 // pred_fallthru
      _
    // Predicated region
    $region30: #{tpu_custom_call.1} parent=1 // pred_check
      _
    $region31: #{tpu_custom_call.1} parent=1 // pred_check_branch
      %78 = sbr.rel (0) target = $region33
    $region32: #{tpu_custom_call.1} parent=1 // pred_region
      %79 = dma.done [#allocation6], 256
    $region33: #{tpu_custom_call.1} parent=1 // pred_fallthru
      _
    // Predicated region
    $region34: #{tpu_custom_call.1} parent=1 // pred_check
      _
    $region35: #{tpu_custom_call.1} parent=1 // pred_check_branch
      %81 = sbr.rel (0) target = $region37
    $region36: #{tpu_custom_call.1} parent=1 // pred_region
      %82 = dma.done [#allocation9], 256
    $region37: #{tpu_custom_call.1} parent=1 // pred_fallthru
      _
    // Predicated region
    $region38: #{tpu_custom_call.1} parent=1 // pred_check
      _
    $region39: #{tpu_custom_call.1} parent=1 // pred_check_branch
      %84 = sbr.rel (0) target = $region41
    $region40: #{tpu_custom_call.1} parent=1 // pred_region
      %85 = dma.done [#allocation9], 256
    $region41: #{tpu_custom_call.1} parent=1 // pred_fallthru
      _
    %s86 = smul.u32 0, 4
    %s87 = scalar_lea.vmem [#allocation2], %s86
    %v88 = vld [vmem:[%s87] sm:$0xf]
    %v89 = vld [vmem:[#allocation5] sm:$0xff]
    %v90 = vld [vmem:[#allocation5 + $0x8] sm:$0xff]
    %v91 = vld [vmem:[#allocation7] sm:$0xff]
    %v92 = vld [vmem:[#allocation7 + $0x8] sm:$0xff]
    %v93 = vld [vmem:[#allocation8] sm:$0xff]
    %v94 = vld [vmem:[#allocation8 + $0x8] sm:$0xff]
    %v95 = vld [vmem:[#allocation10] sm:$0xff]
    %v96 = vld [vmem:[#allocation10 + $0x8] sm:$0xff]
    %98 = vset.pattern.permute.xlu0 0
    %99 = vperm.xlu0 %98, %v88
    %v100 = vpop.permute.xlu0 %99
    %v104 = vcombine.high %v89, %v89
    %v105 = vcombine.high %v90, %v90
    %v108 = vmul.f32 %v100, %v89
    %v109 = vmul.f32 %v100, %v104
    %v110 = vmul.f32 %v100, %v90
    %v111 = vmul.f32 %v100, %v105
    %112 = vset.pattern.permute.xlu0 5
    %113 = vperm.xlu0 %112, %v88
    %v114 = vpop.permute.xlu0 %113
    %v118 = vcombine.high %v91, %v91
    %v119 = vcombine.high %v92, %v92
    %v122 = vmul.f32 %v114, %v91
    %v123 = vmul.f32 %v114, %v118
    %v124 = vmul.f32 %v114, %v92
    %v125 = vmul.f32 %v114, %v119
    %v126 = vadd.f32 %v108, %v122
    %v127 = vadd.f32 %v109, %v123
    %v128 = vadd.f32 %v110, %v124
    %v129 = vadd.f32 %v111, %v125
    %130 = vset.pattern.permute.xlu0 10
    %131 = vperm.xlu0 %130, %v88
    %v132 = vpop.permute.xlu0 %131
    %v136 = vcombine.high %v93, %v93
    %v137 = vcombine.high %v94, %v94
    %v140 = vmul.f32 %v132, %v93
    %v141 = vmul.f32 %v132, %v136
    %v142 = vmul.f32 %v132, %v94
    %v143 = vmul.f32 %v132, %v137
    %v144 = vadd.f32 %v126, %v140
    %v145 = vadd.f32 %v127, %v141
    %v146 = vadd.f32 %v128, %v142
    %v147 = vadd.f32 %v129, %v143
    %148 = vset.pattern.permute.xlu0 15
    %149 = vperm.xlu0 %148, %v88
    %v150 = vpop.permute.xlu0 %149
    %v154 = vcombine.high %v95, %v95
    %v155 = vcombine.high %v96, %v96
    %v158 = vmul.f32 %v150, %v95
    %v159 = vmul.f32 %v150, %v154
    %v160 = vmul.f32 %v150, %v96
    %v161 = vmul.f32 %v150, %v155
    %v162 = vadd.f32 %v144, %v158
    %v163 = vadd.f32 %v145, %v159
    %v164 = vadd.f32 %v146, %v160
    %v165 = vadd.f32 %v147, %v161
    %v170 = vcombine.low %v162, %v163
    %v171 = vcombine.low %v164, %v165
    %174 = vst [vmem:[#allocation11] sm:$0xff] %v170
    %175 = vst [vmem:[#allocation11 + $0x8] sm:$0xff] %v171
    %176 = vset.pattern.permute.xlu0 1
    %177 = vperm.xlu0 %176, %v88
    %v178 = vpop.permute.xlu0 %177
    %v180 = vmul.f32 %v178, %v89
    %v181 = vmul.f32 %v178, %v104
    %v182 = vmul.f32 %v178, %v90
    %v183 = vmul.f32 %v178, %v105
    %184 = vset.pattern.permute.xlu0 6
    %185 = vperm.xlu0 %184, %v88
    %v186 = vpop.permute.xlu0 %185
    %v188 = vmul.f32 %v186, %v91
    %v189 = vmul.f32 %v186, %v118
    %v190 = vmul.f32 %v186, %v92
    %v191 = vmul.f32 %v186, %v119
    %v192 = vadd.f32 %v180, %v188
    %v193 = vadd.f32 %v181, %v189
    %v194 = vadd.f32 %v182, %v190
    %v195 = vadd.f32 %v183, %v191
    %196 = vset.pattern.permute.xlu0 11
    %197 = vperm.xlu0 %196, %v88
    %v198 = vpop.permute.xlu0 %197
    %v200 = vmul.f32 %v198, %v93
    %v201 = vmul.f32 %v198, %v136
    %v202 = vmul.f32 %v198, %v94
    %v203 = vmul.f32 %v198, %v137
    %v204 = vadd.f32 %v192, %v200
    %v205 = vadd.f32 %v193, %v201
    %v206 = vadd.f32 %v194, %v202
    %v207 = vadd.f32 %v195, %v203
    %208 = vset.pattern.permute.xlu0 16
    %209 = vperm.xlu0 %208, %v88
    %v210 = vpop.permute.xlu0 %209
    %v212 = vmul.f32 %v210, %v95
    %v213 = vmul.f32 %v210, %v154
    %v214 = vmul.f32 %v210, %v96
    %v215 = vmul.f32 %v210, %v155
    %v216 = vadd.f32 %v204, %v212
    %v217 = vadd.f32 %v205, %v213
    %v218 = vadd.f32 %v206, %v214
    %v219 = vadd.f32 %v207, %v215
    %v224 = vcombine.low %v216, %v217
    %v225 = vcombine.low %v218, %v219
    %228 = vst [vmem:[#allocation12] sm:$0xff] %v224
    %229 = vst [vmem:[#allocation12 + $0x8] sm:$0xff] %v225
    %230 = vset.pattern.permute.xlu0 2
    %231 = vperm.xlu0 %230, %v88
    %v232 = vpop.permute.xlu0 %231
    %v234 = vmul.f32 %v232, %v89
    %v235 = vmul.f32 %v232, %v104
    %v236 = vmul.f32 %v232, %v90
    %v237 = vmul.f32 %v232, %v105
    %238 = vset.pattern.permute.xlu0 7
    %239 = vperm.xlu0 %238, %v88
    %v240 = vpop.permute.xlu0 %239
    %v242 = vmul.f32 %v240, %v91
    %v243 = vmul.f32 %v240, %v118
    %v244 = vmul.f32 %v240, %v92
    %v245 = vmul.f32 %v240, %v119
    %v246 = vadd.f32 %v234, %v242
    %v247 = vadd.f32 %v235, %v243
    %v248 = vadd.f32 %v236, %v244
    %v249 = vadd.f32 %v237, %v245
    %250 = vset.pattern.permute.xlu0 12
    %251 = vperm.xlu0 %250, %v88
    %v252 = vpop.permute.xlu0 %251
    %v254 = vmul.f32 %v252, %v93
    %v255 = vmul.f32 %v252, %v136
    %v256 = vmul.f32 %v252, %v94
    %v257 = vmul.f32 %v252, %v137
    %v258 = vadd.f32 %v246, %v254
    %v259 = vadd.f32 %v247, %v255
    %v260 = vadd.f32 %v248, %v256
    %v261 = vadd.f32 %v249, %v257
    %262 = vset.pattern.permute.xlu0 17
    %263 = vperm.xlu0 %262, %v88
    %v264 = vpop.permute.xlu0 %263
    %v266 = vmul.f32 %v264, %v95
    %v267 = vmul.f32 %v264, %v154
    %v268 = vmul.f32 %v264, %v96
    %v269 = vmul.f32 %v264, %v155
    %v270 = vadd.f32 %v258, %v266
    %v271 = vadd.f32 %v259, %v267
    %v272 = vadd.f32 %v260, %v268
    %v273 = vadd.f32 %v261, %v269
    %v278 = vcombine.low %v270, %v271
    %v279 = vcombine.low %v272, %v273
    %282 = vst [vmem:[#allocation14] sm:$0xff] %v278
    %283 = vst [vmem:[#allocation14 + $0x8] sm:$0xff] %v279
    %284 = vset.pattern.permute.xlu0 3
    %285 = vperm.xlu0 %284, %v88
    %v286 = vpop.permute.xlu0 %285
    %v288 = vmul.f32 %v286, %v89
    %v289 = vmul.f32 %v286, %v104
    %v290 = vmul.f32 %v286, %v90
    %v291 = vmul.f32 %v286, %v105
    %292 = vset.pattern.permute.xlu0 8
    %293 = vperm.xlu0 %292, %v88
    %v294 = vpop.permute.xlu0 %293
    %v296 = vmul.f32 %v294, %v91
    %v297 = vmul.f32 %v294, %v118
    %v298 = vmul.f32 %v294, %v92
    %v299 = vmul.f32 %v294, %v119
    %v300 = vadd.f32 %v288, %v296
    %v301 = vadd.f32 %v289, %v297
    %v302 = vadd.f32 %v290, %v298
    %v303 = vadd.f32 %v291, %v299
    %304 = vset.pattern.permute.xlu0 13
    %305 = vperm.xlu0 %304, %v88
    %v306 = vpop.permute.xlu0 %305
    %v308 = vmul.f32 %v306, %v93
    %v309 = vmul.f32 %v306, %v136
    %v310 = vmul.f32 %v306, %v94
    %v311 = vmul.f32 %v306, %v137
    %v312 = vadd.f32 %v300, %v308
    %v313 = vadd.f32 %v301, %v309
    %v314 = vadd.f32 %v302, %v310
    %v315 = vadd.f32 %v303, %v311
    %316 = vset.pattern.permute.xlu0 18
    %317 = vperm.xlu0 %316, %v88
    %v318 = vpop.permute.xlu0 %317
    %v320 = vmul.f32 %v318, %v95
    %v321 = vmul.f32 %v318, %v154
    %v322 = vmul.f32 %v318, %v96
    %v323 = vmul.f32 %v318, %v155
    %v324 = vadd.f32 %v312, %v320
    %v325 = vadd.f32 %v313, %v321
    %v326 = vadd.f32 %v314, %v322
    %v327 = vadd.f32 %v315, %v323
    %v332 = vcombine.low %v324, %v325
    %v333 = vcombine.low %v326, %v327
    %336 = vst [vmem:[#allocation15] sm:$0xff] %v332
    %337 = vst [vmem:[#allocation15 + $0x8] sm:$0xff] %v333
    %338 = vset.pattern.permute.xlu0 4
    %339 = vperm.xlu0 %338, %v88
    %v340 = vpop.permute.xlu0 %339
    %v342 = vmul.f32 %v340, %v89
    %v343 = vmul.f32 %v340, %v104
    %v344 = vmul.f32 %v340, %v90
    %v345 = vmul.f32 %v340, %v105
    %346 = vset.pattern.permute.xlu0 9
    %347 = vperm.xlu0 %346, %v88
    %v348 = vpop.permute.xlu0 %347
    %v350 = vmul.f32 %v348, %v91
    %v351 = vmul.f32 %v348, %v118
    %v352 = vmul.f32 %v348, %v92
    %v353 = vmul.f32 %v348, %v119
    %v354 = vadd.f32 %v342, %v350
    %v355 = vadd.f32 %v343, %v351
    %v356 = vadd.f32 %v344, %v352
    %v357 = vadd.f32 %v345, %v353
    %358 = vset.pattern.permute.xlu0 14
    %359 = vperm.xlu0 %358, %v88
    %v360 = vpop.permute.xlu0 %359
    %v362 = vmul.f32 %v360, %v93
    %v363 = vmul.f32 %v360, %v136
    %v364 = vmul.f32 %v360, %v94
    %v365 = vmul.f32 %v360, %v137
    %v366 = vadd.f32 %v354, %v362
    %v367 = vadd.f32 %v355, %v363
    %v368 = vadd.f32 %v356, %v364
    %v369 = vadd.f32 %v357, %v365
    %370 = vset.pattern.permute.xlu0 19
    %371 = vperm.xlu0 %370, %v88
    %v372 = vpop.permute.xlu0 %371
    %v374 = vmul.f32 %v372, %v95
    %v375 = vmul.f32 %v372, %v154
    %v376 = vmul.f32 %v372, %v96
    %v377 = vmul.f32 %v372, %v155
    %v378 = vadd.f32 %v366, %v374
    %v379 = vadd.f32 %v367, %v375
    %v380 = vadd.f32 %v368, %v376
    %v381 = vadd.f32 %v369, %v377
    %v386 = vcombine.low %v378, %v379
    %v387 = vcombine.low %v380, %v381
    %390 = vst [vmem:[#allocation17] sm:$0xff] %v386
    %391 = vst [vmem:[#allocation17 + $0x8] sm:$0xff] %v387
    // Predicated region
    $region42: #{tpu_custom_call.1} parent=1 // pred_check
      _
    $region43: #{tpu_custom_call.1} parent=1 // pred_check_branch
      %393 = sbr.rel (0) target = $region45
    $region44: #{tpu_custom_call.1} parent=1 // pred_region
      %s395 = ssub.s32 256, 256
      %396 = vsyncadd [#allocation4], %s395
      %s398 = sshll.u32 [#allocation11], 4
      %s399 = int_to_ptr.vmem [resolvable:$true] %s398
      %401 = dma.vmem_to_hbm [thread:$0]  %s399, 256, %s5, [#allocation4]
    $region45: #{tpu_custom_call.1} parent=1 // pred_fallthru
      _
    // Predicated region
    $region46: #{tpu_custom_call.1} parent=1 // pred_check
      _
    $region47: #{tpu_custom_call.1} parent=1 // pred_check_branch
      %403 = sbr.rel (0) target = $region49
    $region48: #{tpu_custom_call.1} parent=1 // pred_region
      %s405 = ssub.s32 256, 256
      %406 = vsyncadd [#allocation13], %s405
      %s408 = sshll.u32 [#allocation12], 4
      %s409 = int_to_ptr.vmem [resolvable:$true] %s408
      %411 = dma.vmem_to_hbm [thread:$0]  %s409, 256, %s6, [#allocation13]
    $region49: #{tpu_custom_call.1} parent=1 // pred_fallthru
      _
    // Predicated region
    $region50: #{tpu_custom_call.1} parent=1 // pred_check
      _
    $region51: #{tpu_custom_call.1} parent=1 // pred_check_branch
      %413 = sbr.rel (0) target = $region53
    $region52: #{tpu_custom_call.1} parent=1 // pred_region
      %s415 = ssub.s32 256, 256
      %416 = vsyncadd [#allocation13], %s415
      %s418 = sshll.u32 [#allocation14], 4
      %s419 = int_to_ptr.vmem [resolvable:$true] %s418
      %421 = dma.vmem_to_hbm [thread:$0]  %s419, 256, %s7, [#allocation13]
    $region53: #{tpu_custom_call.1} parent=1 // pred_fallthru
      _
    // Predicated region
    $region54: #{tpu_custom_call.1} parent=1 // pred_check
      _
    $region55: #{tpu_custom_call.1} parent=1 // pred_check_branch
      %423 = sbr.rel (0) target = $region57
    $region56: #{tpu_custom_call.1} parent=1 // pred_region
      %s425 = ssub.s32 256, 256
      %426 = vsyncadd [#allocation16], %s425
      %s428 = sshll.u32 [#allocation15], 4
      %s429 = int_to_ptr.vmem [resolvable:$true] %s428
      %431 = dma.vmem_to_hbm [thread:$0]  %s429, 256, %s8, [#allocation16]
    $region57: #{tpu_custom_call.1} parent=1 // pred_fallthru
      _
    // Predicated region
    $region58: #{tpu_custom_call.1} parent=1 // pred_check
      _
    $region59: #{tpu_custom_call.1} parent=1 // pred_check_branch
      %433 = sbr.rel (0) target = $region61
    $region60: #{tpu_custom_call.1} parent=1 // pred_region
      %s435 = ssub.s32 256, 256
      %436 = vsyncadd [#allocation16], %s435
      %s438 = sshll.u32 [#allocation17], 4
      %s439 = int_to_ptr.vmem [resolvable:$true] %s438
      %441 = dma.vmem_to_hbm [thread:$0]  %s439, 256, %s9, [#allocation16]
    $region61: #{tpu_custom_call.1} parent=1 // pred_fallthru
      _
    // Predicated region
    $region62: #{tpu_custom_call.1} parent=1 // pred_check
      _
    $region63: #{tpu_custom_call.1} parent=1 // pred_check_branch
      %443 = sbr.rel (0) target = $region65
    $region64: #{tpu_custom_call.1} parent=1 // pred_region
      %444 = dma.done [#allocation4], 256
    $region65: #{tpu_custom_call.1} parent=1 // pred_fallthru
      _
    // Predicated region
    $region66: #{tpu_custom_call.1} parent=1 // pred_check
      _
    $region67: #{tpu_custom_call.1} parent=1 // pred_check_branch
      %446 = sbr.rel (0) target = $region69
    $region68: #{tpu_custom_call.1} parent=1 // pred_region
      %447 = dma.done [#allocation13], 256
    $region69: #{tpu_custom_call.1} parent=1 // pred_fallthru
      _
    // Predicated region
    $region70: #{tpu_custom_call.1} parent=1 // pred_check
      _
    $region71: #{tpu_custom_call.1} parent=1 // pred_check_branch
      %449 = sbr.rel (0) target = $region73
    $region72: #{tpu_custom_call.1} parent=1 // pred_region
      %450 = dma.done [#allocation13], 256
    $region73: #{tpu_custom_call.1} parent=1 // pred_fallthru
      _
    // Predicated region
    $region74: #{tpu_custom_call.1} parent=1 // pred_check
      _
    $region75: #{tpu_custom_call.1} parent=1 // pred_check_branch
      %452 = sbr.rel (0) target = $region77
    $region76: #{tpu_custom_call.1} parent=1 // pred_region
      %453 = dma.done [#allocation16], 256
    $region77: #{tpu_custom_call.1} parent=1 // pred_fallthru
      _
    // Predicated region
    $region78: #{tpu_custom_call.1} parent=1 // pred_check
      _
    $region79: #{tpu_custom_call.1} parent=1 // pred_check_branch
      %455 = sbr.rel (0) target = $region81
    $region80: #{tpu_custom_call.1} parent=1 // pred_region
      %456 = dma.done [#allocation16], 256
    $region81: #{tpu_custom_call.1} parent=1 // pred_fallthru
      _
    %457 = vsyncpa [#allocation3], 1
    %458 = vsyncpa [#allocation6], 1
    %459 = vsyncpa [#allocation9], 1
    %460 = vsyncpa [#allocation4], 1
    %461 = vsyncpa [#allocation13], 1
    %462 = vsyncpa [#allocation16], 1

</llo_original>
